<compile_context>
chip_gen: v6e
topology: v6e:2x2x1
jax: 0.10.0
libtpu: 0.0.40
codegen_flags: <defaults>
</compile_context>

<pallas_src>
import functools

import jax
import jax.numpy as jnp
from jax.experimental import pallas as pl
from jax.experimental.pallas import tpu as pltpu

_LANES = 128
_MAX_TILE_ROWS = 8192   # (8192, 128) f32 = 4 MiB per input block
_NUM_CORES = 2          # leading "parallel" grid axis (v7x megacore)


def _round_up(x, m):
    return ((x + m - 1) // m) * m


def _bpr_kernel(*refs, gamma, tile_rows, blocks_per_core, full_rows,
                rem_lanes, mask_needed, has_ipw):
    # refs = (pos_ref, neg_ref, [ipw_ref], out_ref)
    if has_ipw:
        pos_ref, neg_ref, ipw_ref, out_ref = refs
    else:
        pos_ref, neg_ref, out_ref = refs
        ipw_ref = None

    c = pl.program_id(0)   # core index (parallel)
    i = pl.program_id(1)   # block index within this core (reduction axis)

    @pl.when(i == 0)
    def _init():
        out_ref[...] = jnp.zeros_like(out_ref)

    # Native-dtype DMA, cast on the VPU (free under the HBM roofline).
    pos = pos_ref[...].astype(jnp.float32)
    neg = neg_ref[...].astype(jnp.float32)
    # sigmoid -> XLA logistic -> single tanh EUP op; + log = 2 transcendentals.
    val = -jnp.log(gamma + jax.nn.sigmoid(pos - neg))
    if ipw_ref is not None:
        val = val * ipw_ref[...].astype(jnp.float32)

    if mask_needed:
        # Mask padding lanes / out-of-bounds rows / clamped duplicate blocks.
        # Compare global 128-lane *row* indices so nothing overflows int32
        # until ~2^31 rows (~2^38 elements).
        row = jax.lax.broadcasted_iota(jnp.int32, val.shape, 0)
        grow = (c * blocks_per_core + i) * tile_rows + row
        valid = grow < full_rows
        if rem_lanes:
            lane = jax.lax.broadcasted_iota(jnp.int32, val.shape, 1)
            valid = valid | ((grow == full_rows) & (lane < rem_lanes))
        val = jnp.where(valid, val, 0.0)

    # (T,128) -> (T//8, 8, 128); sum over the major axis is pure VALU vreg
    # adds folded into this core's resident (8,128) output accumulator.
    out_ref[0] = out_ref[0] + val.reshape(-1, 8, _LANES).sum(axis=0)


def bpr_loss(pos_score, neg_score, ipw=None, gamma=1e-10):
    """Pallas TPU implementation of BPRLoss.forward. Returns a scalar f32."""
    assert pos_score.shape == neg_score.shape and pos_score.ndim == 1
    n = pos_score.shape[0]
    if n == 0:
        # torch .mean() over an empty tensor is NaN.
        return jnp.float32(float("nan"))

    rows = pl.cdiv(n, _LANES)
    if rows <= 4 * 8:
        # Tiny input: one sublane-aligned block that equals the padded array.
        rows_p = _round_up(rows, 8)
        tile_rows = rows_p
    else:
        # Per-core row share (2 cores), 16-row aligned (bf16 sublane packing),
        # capped at 4 MiB (f32) per block.
        rows_p = rows
        tile_rows = min(_MAX_TILE_ROWS,
                        _round_up(pl.cdiv(rows, _NUM_CORES), 16))

    n_pad = rows_p * _LANES
    total_blocks = pl.cdiv(rows_p, tile_rows)
    blocks_per_core = pl.cdiv(total_blocks, _NUM_CORES)
    last_block = total_blocks - 1
    # Mask whenever the grid covers more element slots than real inputs.
    mask_needed = (_NUM_CORES * blocks_per_core * tile_rows * _LANES) != n

    def _prep(x):
        # Keep native dtype; pad only when N is not a multiple of 128.
        if n_pad != n:
            x = jnp.pad(x, (0, n_pad - n))
        return x.reshape(rows_p, _LANES)

    inputs = [_prep(pos_score), _prep(neg_score)]
    has_ipw = ipw is not None
    if has_ipw:
        assert ipw.shape == pos_score.shape
        inputs.append(_prep(ipw))

    # Contiguous row ranges per core; clamp so an odd block count never
    # produces an out-of-range block index (the duplicate block is masked).
    in_spec = pl.BlockSpec(
        (tile_rows, _LANES),
        lambda c, i: (jnp.minimum(c * blocks_per_core + i, last_block), 0))
    out_spec = pl.BlockSpec((1, 8, _LANES), lambda c, i: (c, 0, 0))

    kernel = functools.partial(
        _bpr_kernel,
        gamma=float(gamma),
        tile_rows=tile_rows,
        blocks_per_core=blocks_per_core,
        full_rows=n // _LANES,
        rem_lanes=n % _LANES,
        mask_needed=mask_needed,
        has_ipw=has_ipw,
    )

    bytes_in = sum(int(x.size) * x.dtype.itemsize for x in inputs)
    cost = pl.CostEstimate(
        flops=6 * n,
        transcendentals=2 * n,
        bytes_accessed=bytes_in + _NUM_CORES * 8 * _LANES * 4,
    )

    # 3 inputs x 2 pipeline buffers of (tile_rows, 128) must fit scoped VMEM
    # (v5e's default is only 16 MiB).
    vmem_need = len(inputs) * 2 * tile_rows * _LANES * inputs[0].dtype.itemsize
    vmem_limit = int(min(60 * 2**20, max(32 * 2**20, vmem_need + 8 * 2**20)))

    partials = pl.pallas_call(
        kernel,
        out_shape=jax.ShapeDtypeStruct((_NUM_CORES, 8, _LANES), jnp.float32),
        grid=(_NUM_CORES, blocks_per_core),
        in_specs=[in_spec] * len(inputs),
        out_specs=out_spec,
        compiler_params=pltpu.CompilerParams(
            dimension_semantics=("parallel", "arbitrary"),
            vmem_limit_bytes=vmem_limit),
        cost_estimate=cost,
    )(*inputs)

    return jnp.sum(partials) / jnp.float32(n)


def _bpr_loss_ref(pos_score, neg_score, ipw=None, gamma=1e-10):
    v = -jnp.log(gamma + jax.nn.sigmoid(pos_score - neg_score))
    if ipw is not None:
        v = v * ipw
    return jnp.mean(v)


if __name__ == "__main__":
    key = jax.random.PRNGKey(0)
    k1, k2, k3 = jax.random.split(key, 3)
    N = 8  # matches the (N,) shape contract of BPRLoss

    pos_score = jax.random.normal(k1, (N,), dtype=jnp.float32)
    neg_score = jax.random.normal(k2, (N,), dtype=jnp.float32)
    ipw = jax.random.uniform(k3, (N,), dtype=jnp.float32) + 0.5

    # no-ipw branch
    loss = bpr_loss(pos_score, neg_score)
    jax.block_until_ready(loss)
    ref = _bpr_loss_ref(pos_score, neg_score)
    assert jnp.allclose(loss, ref, atol=1e-5, rtol=1e-4), (loss, ref)

    # ipw branch
    loss_w = bpr_loss(pos_score, neg_score, ipw=ipw)
    jax.block_until_ready(loss_w)
    ref_w = _bpr_loss_ref(pos_score, neg_score, ipw=ipw)
    assert jnp.allclose(loss_w, ref_w, atol=1e-5, rtol=1e-4), (loss_w, ref_w)

    # ragged N (tiny path, padding lanes masked in-kernel)
    k4, k5 = jax.random.split(k3)
    M = 1000
    p2 = jax.random.normal(k4, (M,), dtype=jnp.float32)
    n2 = jax.random.normal(k5, (M,), dtype=jnp.float32)
    loss2 = bpr_loss(p2, n2)
    jax.block_until_ready(loss2)
    ref2 = _bpr_loss_ref(p2, n2)
    assert jnp.allclose(loss2, ref2, atol=1e-5, rtol=1e-4), (loss2, ref2)

    # larger ragged N: exercises the 2-core split, a partial last block and
    # the in-kernel row/lane mask.
    k6, k7 = jax.random.split(k5)
    L = 50_000
    p3 = jax.random.normal(k6, (L,), dtype=jnp.float32)
    n3 = jax.random.normal(k7, (L,), dtype=jnp.float32)
    loss3 = bpr_loss(p3, n3)
    jax.block_until_ready(loss3)
    ref3 = _bpr_loss_ref(p3, n3)
    assert jnp.allclose(loss3, ref3, atol=1e-5, rtol=1e-4), (loss3, ref3)

    print("KERNEL_OK")
</pallas_src>

<mosaic_0001>
module attributes {stable_mosaic.version = 11 : i64} {
  func.func @_bpr_kernel(%arg0: i32, %arg1: i32, %arg2: memref<8x128xf32, #tpu.memory_space<vmem>>, %arg3: memref<8x128xf32, #tpu.memory_space<vmem>>, %arg4: memref<1x8x128xf32, #tpu.memory_space<vmem>>) attributes {dimension_semantics = [#tpu.dimension_semantics<parallel>, #tpu.dimension_semantics<arbitrary>], iteration_bounds = array<i64: 2, 1>, scalar_prefetch = 0 : i64, scratch_operands = 0 : i64, tpu.core_type = #tpu.core_type<tc>, window_params = [{transform_indices = @transform_0, window_bounds = array<i64: 8, 128>}, {transform_indices = @transform_1, window_bounds = array<i64: 8, 128>}, {transform_indices = @transform_2, window_bounds = array<i64: 1, 8, 128>}]} {
    %c0_i32 = arith.constant 0 : i32
    %0 = arith.cmpi eq, %arg1, %c0_i32 : i32
    %1 = arith.extui %0 : i1 to i32
    %c0_i32_0 = arith.constant 0 : i32
    %2 = arith.cmpi ne, %1, %c0_i32_0 : i32
    scf.if %2 {
      %cst_17 = arith.constant 0.000000e+00 : f32
      %41 = vector.broadcast %cst_17 : f32 to vector<1x8x128xf32>
      %c0_18 = arith.constant 0 : index
      %c0_19 = arith.constant 0 : index
      %c0_20 = arith.constant 0 : index
      %42 = vector.load %arg4[%c0_18, %c0_19, %c0_20] : memref<1x8x128xf32, #tpu.memory_space<vmem>>, vector<1x8x128xf32>
      tpu.vector_store %arg4[%c0_18, %c0_19, %c0_20], %41 {strides = array<i32>} : memref<1x8x128xf32, #tpu.memory_space<vmem>>, vector<1x8x128xf32>,
    } else {
    }
    %c0 = arith.constant 0 : index
    %c0_1 = arith.constant 0 : index
    %3 = vector.load %arg2[%c0, %c0_1] : memref<8x128xf32, #tpu.memory_space<vmem>>, vector<8x128xf32>
    %c0_2 = arith.constant 0 : index
    %c0_3 = arith.constant 0 : index
    %4 = vector.load %arg3[%c0_2, %c0_3] : memref<8x128xf32, #tpu.memory_space<vmem>>, vector<8x128xf32>
    %5 = arith.subf %3, %4 : vector<8x128xf32>
    %6 = arith.negf %5 : vector<8x128xf32>
    %7 = math.exp %6 : vector<8x128xf32>
    %cst = arith.constant 1.000000e+00 : f32
    %8 = vector.broadcast %cst : f32 to vector<8x128xf32>
    %9 = arith.addf %8, %7 : vector<8x128xf32>
    %10 = arith.divf %8, %9 : vector<8x128xf32>
    %cst_4 = arith.constant 1.000000e-10 : f32
    %11 = vector.broadcast %cst_4 : f32 to vector<8x128xf32>
    %12 = arith.addf %11, %10 : vector<8x128xf32>
    %13 = math.log %12 : vector<8x128xf32>
    %cst_5 = arith.constant 0.000000e+00 : f32
    %14 = vector.broadcast %cst_5 : f32 to vector<8x128xf32>
    %15 = arith.subf %14, %13 : vector<8x128xf32>
    %16 = tpu.iota {dimensions = array<i32: 0>} : vector<8x128xi32>
    %c1_i32 = arith.constant 1 : i32
    %17 = arith.muli %arg0, %c1_i32 : i32
    %18 = arith.addi %17, %arg1 : i32
    %c8_i32 = arith.constant 8 : i32
    %19 = arith.muli %18, %c8_i32 : i32
    %20 = vector.broadcast %19 : i32 to vector<8x128xi32>
    %21 = arith.addi %20, %16 : vector<8x128xi32>
    %c0_i32_6 = arith.constant 0 : i32
    %22 = vector.broadcast %c0_i32_6 : i32 to vector<8x128xi32>
    %23 = arith.cmpi slt, %21, %22 : vector<8x128xi32>
    %24 = tpu.iota {dimensions = array<i32: 1>} : vector<8x128xi32>
    %c0_i32_7 = arith.constant 0 : i32
    %25 = vector.broadcast %c0_i32_7 : i32 to vector<8x128xi32>
    %26 = arith.cmpi eq, %21, %25 : vector<8x128xi32>
    %c8_i32_8 = arith.constant 8 : i32
    %27 = vector.broadcast %c8_i32_8 : i32 to vector<8x128xi32>
    %28 = arith.cmpi slt, %24, %27 : vector<8x128xi32>
    %29 = arith.andi %26, %28 : vector<8x128xi1>
    %30 = arith.ori %23, %29 : vector<8x128xi1>
    %cst_9 = arith.constant 0.000000e+00 : f32
    %31 = vector.broadcast %cst_9 : f32 to vector<8x128xf32>
    %32 = arith.select %30, %15, %31 : vector<8x128xi1>, vector<8x128xf32>
    %c0_10 = arith.constant 0 : index
    %c0_11 = arith.constant 0 : index
    %c0_12 = arith.constant 0 : index
    %33 = vector.load %arg4[%c0_10, %c0_11, %c0_12] : memref<1x8x128xf32, #tpu.memory_space<vmem>>, vector<1x8x128xf32>
    %34 = vector.shape_cast %33 : vector<1x8x128xf32> to vector<8x128xf32>
    %35 = vector.shape_cast %32 : vector<8x128xf32> to vector<1x8x128xf32>
    %cst_13 = arith.constant dense<0.000000e+00> : vector<8x128xf32>
    %36 = vector.multi_reduction <add>, %35, %cst_13 [0] : vector<1x8x128xf32> to vector<8x128xf32>
    %37 = arith.addf %34, %36 : vector<8x128xf32>
    %c0_14 = arith.constant 0 : index
    %c0_15 = arith.constant 0 : index
    %c0_16 = arith.constant 0 : index
    %38 = vector.load %arg4[%c0_14, %c0_15, %c0_16] : memref<1x8x128xf32, #tpu.memory_space<vmem>>, vector<1x8x128xf32>
    %39 = vector.shape_cast %38 : vector<1x8x128xf32> to vector<8x128xf32>
    %40 = vector.shape_cast %37 : vector<8x128xf32> to vector<1x8x128xf32>
    tpu.vector_store %arg4[%c0_14, %c0_15, %c0_16], %40 {strides = array<i32>} : memref<1x8x128xf32, #tpu.memory_space<vmem>>, vector<1x8x128xf32>,
    return
  }
  func.func @transform_0(%arg0: i32, %arg1: i32) -> (i32, i32) {
    %c1_i32 = arith.constant 1 : i32
    %0 = arith.muli %arg0, %c1_i32 : i32
    %1 = arith.addi %0, %arg1 : i32
    %c0_i32 = arith.constant 0 : i32
    %2 = arith.minsi %1, %c0_i32 : i32
    %c0_i32_0 = arith.constant 0 : i32
    %c0_i32_1 = arith.constant 0 : i32
    return %2, %c0_i32_0 : i32, i32
  }
  func.func @transform_1(%arg0: i32, %arg1: i32) -> (i32, i32) {
    %c1_i32 = arith.constant 1 : i32
    %0 = arith.muli %arg0, %c1_i32 : i32
    %1 = arith.addi %0, %arg1 : i32
    %c0_i32 = arith.constant 0 : i32
    %2 = arith.minsi %1, %c0_i32 : i32
    %c0_i32_0 = arith.constant 0 : i32
    %c0_i32_1 = arith.constant 0 : i32
    return %2, %c0_i32_0 : i32, i32
  }
  func.func @transform_2(%arg0: i32, %arg1: i32) -> (i32, i32, i32) {
    %c0_i32 = arith.constant 0 : i32
    %c0_i32_0 = arith.constant 0 : i32
    %c0_i32_1 = arith.constant 0 : i32
    return %arg0, %c0_i32, %c0_i32_0 : i32, i32, i32
  }
}

</mosaic_0001>

<llo_original>
// kernel: tpu_custom_call.1
$region0: #{tpu_custom_call.1}
  #allocation0 [shape = 'u32[]', space=smem, size = 0x4, offset = 0x4, fixed_abs, tag = 'smem constant byte address 0x4 - core index']
  #allocation1 [shape = 'u32[144,128]{1,0:T(1,128)}', space=vmem, size = 0x12000, scoped, tag = 'internal scratch']
  %s0 = inlined_call_operand.hbm [shape: f32[8,128], index: 0, kind: input, shape index: {}]
  %s1 = inlined_call_operand.hbm [shape: f32[8,128], index: 1, kind: input, shape index: {}]
  %s2 = inlined_call_operand.hbm [shape: f32[2,8,128], index: 2, kind: output, shape index: {}]
  %s3 = sld [smem:[#allocation0]]
  $region53: #{tpu_custom_call.1} parent=0
    _
  %s5 = ssub.s32 1, %s3
  %s6 = scalar_select 0, %s5, %s3
  $region1: #{tpu_custom_call.1} parent=0
    #allocation2 [shape = 'u8[8192]{0}', space=vmem, size = 0x2000, scoped, tag = 'input window, operand 0']
    #allocation3 [shape = 's32[2]{0}', space=sflag, size = 0x8, scoped, tag = 'scoped memory for tpu_custom_call.1']
    #allocation4 [shape = 's32[2]{0}', space=sflag, size = 0x8, scoped, tag = 'scoped memory for tpu_custom_call.1']
    #allocation5 [shape = 'u8[8192]{0}', space=vmem, size = 0x2000, scoped, tag = 'input window, operand 1']
    #allocation6 [shape = 's32[2]{0}', space=sflag, size = 0x8, scoped, tag = 'scoped memory for tpu_custom_call.1']
    #allocation7 [shape = 'u8[8192]{0}', space=vmem, size = 0x2000, scoped, tag = 'output window, operand 0']
    %7 = vsyncpa [#allocation3], 0
    %s8 = scalar_lea.sflag [#allocation3], 1
    %9 = vsyncpa %s8, 0
    %10 = vsyncpa [#allocation6], 0
    %s11 = scalar_lea.sflag [#allocation6], 1
    %12 = vsyncpa %s11, 0
    %13 = vsyncpa [#allocation4], 0
    %s14 = scalar_lea.sflag [#allocation4], 1
    %15 = vsyncpa %s14, 0
    loop: start=0, step=1, limit=4
    $region2: #{tpu_custom_call.1} parent=1 // loop_pre_header
      _
    $region3: #{tpu_custom_call.1} parent=1 // loop_header
      %s17 = sphi 0, %s21
      %p18 = scmp.ge.s32.totalorder %s17, 4
      %s24 = sphi 0, %s36
      %s25 = sphi 0, %s32
      %s26 = sphi 0, %s24
      %s27 = sphi 0, %s25
      %s28 = sphi 0, %s26
      %s29 = sphi 0, %s27
      %s45 = sphi 0, %s47
      %s48 = sphi 0, %s45
      %s49 = sphi 0, %s48
      %s65 = sphi 0, %s49
      %s77 = sphi 0, %s79
      %s80 = sphi 0, %s77
      %s81 = sphi 0, %s80
      %s97 = sphi 0, %s81
      %s103 = sphi 0, %s105
      %s106 = sphi 0, %s103
      %s107 = sphi 0, %s106
      %s123 = sphi 0, %s107
    $region4: #{tpu_custom_call.1} parent=1 // loop_header_branch
      %20 = sbr.rel (%p18) target = $region8
    $region5: #{tpu_custom_call.1} parent=1 // loop_body
      %s22 = ssub.s32 %s17, 1
      %s23 = ssub.s32 %s17, 2
      %s30 = sadd.s32 1, %s25
      %p31 = scmp.ge.s32.totalorder %s30, 1
      %s32 = scalar_select %p31, 0, %s30
      %s33 = sadd.s32 1, %s24
      %s34 = scalar_select %p31, %s33, %s24
      %p35 = scmp.ge.s32.totalorder %s34, 2
      %s36 = scalar_select %p35, 0, %s34
      %s37 = sadd.s32 %s24, %s25
      %p38 = scmp.lt.s32.totalorder %s37, 0
      %s39 = scalar_select %p38, %s37, 0
      %s40 = sadd.s32 %s36, %s32
      %p41 = scmp.lt.s32.totalorder %s40, 0
      %s42 = scalar_select %p41, %s40, 0
      %s43 = ssub.s32 %s39, %s42
      %p44 = scmp.eq.s32.totalorder %s43, 0
      %s46 = sadd.s32 %s45, 1
      %s47 = scalar_select %p44, %s45, %s46
      %p50 = pneg %p44
      %p51 = scmp.eq.s32.totalorder %s17, 1
      %p52 = por %p50, %p51
      %p53 = scmp.ne.s32.totalorder %s45, %s48
      %p54 = scmp.eq.s32.totalorder %s17, 0
      %p55 = por %p53, %p54
      %p56 = scmp.ne.s32.totalorder %s45, %s48
      %p57 = scmp.eq.s32.totalorder %s22, 1
      %p58 = por %p56, %p57
      %p59 = scmp.ne.s32.totalorder %s48, %s49
      %p60 = scmp.eq.s32.totalorder %s22, 0
      %p61 = por %p59, %p60
      %p62 = scmp.ne.s32.totalorder %s48, %s49
      %p63 = scmp.eq.s32.totalorder %s23, 1
      %p64 = por %p62, %p63
      %p66 = scmp.ne.s32.totalorder %s49, %s65
      %p67 = scmp.eq.s32.totalorder %s23, 0
      %p68 = por %p66, %p67
      %s69 = sadd.s32 %s24, %s25
      %p70 = scmp.lt.s32.totalorder %s69, 0
      %s71 = scalar_select %p70, %s69, 0
      %s72 = sadd.s32 %s36, %s32
      %p73 = scmp.lt.s32.totalorder %s72, 0
      %s74 = scalar_select %p73, %s72, 0
      %s75 = ssub.s32 %s71, %s74
      %p76 = scmp.eq.s32.totalorder %s75, 0
      %s78 = sadd.s32 %s77, 1
      %s79 = scalar_select %p76, %s77, %s78
      %p82 = pneg %p76
      %p83 = scmp.eq.s32.totalorder %s17, 1
      %p84 = por %p82, %p83
      %p85 = scmp.ne.s32.totalorder %s77, %s80
      %p86 = scmp.eq.s32.totalorder %s17, 0
      %p87 = por %p85, %p86
      %p88 = scmp.ne.s32.totalorder %s77, %s80
      %p89 = scmp.eq.s32.totalorder %s22, 1
      %p90 = por %p88, %p89
      %p91 = scmp.ne.s32.totalorder %s80, %s81
      %p92 = scmp.eq.s32.totalorder %s22, 0
      %p93 = por %p91, %p92
      %p94 = scmp.ne.s32.totalorder %s80, %s81
      %p95 = scmp.eq.s32.totalorder %s23, 1
      %p96 = por %p94, %p95
      %p98 = scmp.ne.s32.totalorder %s81, %s97
      %p99 = scmp.eq.s32.totalorder %s23, 0
      %p100 = por %p98, %p99
      %s101 = ssub.s32 %s24, %s36
      %p102 = scmp.eq.s32.totalorder %s101, 0
      %s104 = sadd.s32 %s103, 1
      %s105 = scalar_select %p102, %s103, %s104
      %p108 = pneg %p102
      %p109 = scmp.eq.s32.totalorder %s17, 1
      %p110 = por %p108, %p109
      %p111 = scmp.ne.s32.totalorder %s103, %s106
      %p112 = scmp.eq.s32.totalorder %s17, 0
      %p113 = por %p111, %p112
      %p114 = scmp.ne.s32.totalorder %s103, %s106
      %p115 = scmp.eq.s32.totalorder %s22, 1
      %p116 = por %p114, %p115
      %p117 = scmp.ne.s32.totalorder %s106, %s107
      %p118 = scmp.eq.s32.totalorder %s22, 0
      %p119 = por %p117, %p118
      %p120 = scmp.ne.s32.totalorder %s106, %s107
      %p121 = scmp.eq.s32.totalorder %s23, 1
      %p122 = por %p120, %p121
      %p124 = scmp.ne.s32.totalorder %s107, %s123
      %p125 = scmp.eq.s32.totalorder %s23, 0
      %p126 = por %p124, %p125
      %p127 = scmp.le.s32.totalorder 1, %s17
      %p128 = scmp.lt.s32.totalorder %s17, 3
      %p129 = pnand %p127, %p128
      %p130 = pneg %p129
      // Predicated region
      $region9: #{tpu_custom_call.1} parent=5 // pred_check
        _
      $region10: #{tpu_custom_call.1} parent=5 // pred_check_branch
        %132 = sbr.rel (%p129) target = $region12
      $region11: #{tpu_custom_call.1} parent=5 // pred_region
        %s133 = ssub.s32 %s17, 1
      $region12: #{tpu_custom_call.1} parent=5 // pred_fallthru
        _
      %p134 = scmp.lt.s32.totalorder %s17, 2
      // Predicated region
      $region13: #{tpu_custom_call.1} parent=5 // pred_check
        %p135 = pneg %p134
      $region14: #{tpu_custom_call.1} parent=5 // pred_check_branch
        %137 = sbr.rel (%p135) target = $region16
      $region15: #{tpu_custom_call.1} parent=5 // pred_region
        // Predicated region
        $region17: #{tpu_custom_call.1} parent=15 // pred_check
          %p138 = pneg %p55
        $region18: #{tpu_custom_call.1} parent=15 // pred_check_branch
          %140 = sbr.rel (%p138) target = $region20
        $region19: #{tpu_custom_call.1} parent=15 // pred_region
          %s141 = sand.u32 %s45, 1
          %s142 = scalar_lea.sflag [#allocation3], %s141
          %s143 = sand.u32 %s45, 1
          %s144 = smul.addr %s143, 8
          %s145 = scalar_lea.vmem [#allocation2], %s144
          %s146 = sadd.s32 %s24, %s25
          %p147 = scmp.lt.s32.totalorder %s146, 0
          %s148 = scalar_select %p147, %s146, 0
          %s150 = ssub.s32 128, 128
          %151 = vsyncadd %s142, %s150
          %s152 = smul.addr %s148, 128
          %s153 = scalar_lea.hbm %s0, %s152
          %s155 = sshll.u32 %s145, 4
          %s156 = int_to_ptr.vmem [resolvable:$true] %s155
          %158 = dma.hbm_to_vmem [thread:$0]  %s153, 128, %s156, %s142
        $region20: #{tpu_custom_call.1} parent=15 // pred_fallthru
          _
        // Predicated region
        $region21: #{tpu_custom_call.1} parent=15 // pred_check
          %p159 = pneg %p87
        $region22: #{tpu_custom_call.1} parent=15 // pred_check_branch
          %161 = sbr.rel (%p159) target = $region24
        $region23: #{tpu_custom_call.1} parent=15 // pred_region
          %s162 = sand.u32 %s77, 1
          %s163 = scalar_lea.sflag [#allocation6], %s162
          %s164 = sand.u32 %s77, 1
          %s165 = smul.addr %s164, 8
          %s166 = scalar_lea.vmem [#allocation5], %s165
          %s167 = sadd.s32 %s24, %s25
          %p168 = scmp.lt.s32.totalorder %s167, 0
          %s169 = scalar_select %p168, %s167, 0
          %s171 = ssub.s32 128, 128
          %172 = vsyncadd %s163, %s171
          %s173 = smul.addr %s169, 128
          %s174 = scalar_lea.hbm %s1, %s173
          %s176 = sshll.u32 %s166, 4
          %s177 = int_to_ptr.vmem [resolvable:$true] %s176
          %179 = dma.hbm_to_vmem [thread:$0]  %s174, 128, %s177, %s163
        $region24: #{tpu_custom_call.1} parent=15 // pred_fallthru
          _
      $region16: #{tpu_custom_call.1} parent=5 // pred_fallthru
        _
      %p180 = scmp.le.s32.totalorder 1, %s17
      %p181 = scmp.lt.s32.totalorder %s17, 3
      %p182 = pnand %p180, %p181
      %p183 = pneg %p182
      // Predicated region
      $region25: #{tpu_custom_call.1} parent=5 // pred_check
        _
      $region26: #{tpu_custom_call.1} parent=5 // pred_check_branch
        %185 = sbr.rel (%p182) target = $region28
      $region27: #{tpu_custom_call.1} parent=5 // pred_region
        %s186 = ssub.s32 %s17, 1
        %s187 = sand.u32 %s48, 1
        %s188 = scalar_lea.sflag [#allocation3], %s187
        %s189 = sand.u32 %s48, 1
        %s190 = smul.addr %s189, 8
        %s191 = scalar_lea.vmem [#allocation2], %s190
        // Predicated region
        $region29: #{tpu_custom_call.1} parent=27 // pred_check
          %p192 = pneg %p61
        $region30: #{tpu_custom_call.1} parent=27 // pred_check_branch
          %194 = sbr.rel (%p192) target = $region32
        $region31: #{tpu_custom_call.1} parent=27 // pred_region
          %195 = dma.done %s188, 128
        $region32: #{tpu_custom_call.1} parent=27 // pred_fallthru
          _
        %s196 = sand.u32 %s80, 1
        %s197 = scalar_lea.sflag [#allocation6], %s196
        %s198 = sand.u32 %s80, 1
        %s199 = smul.addr %s198, 8
        %s200 = scalar_lea.vmem [#allocation5], %s199
        // Predicated region
        $region33: #{tpu_custom_call.1} parent=27 // pred_check
          %p201 = pneg %p93
        $region34: #{tpu_custom_call.1} parent=27 // pred_check_branch
          %203 = sbr.rel (%p201) target = $region36
        $region35: #{tpu_custom_call.1} parent=27 // pred_region
          %204 = dma.done %s197, 128
        $region36: #{tpu_custom_call.1} parent=27 // pred_fallthru
          _
        %s205 = sand.u32 %s48, 1
        %s206 = scalar_lea.sflag [#allocation3], %s205
        %s207 = sand.u32 %s48, 1
        %s208 = smul.addr %s207, 8
        %s209 = scalar_lea.vmem [#allocation2], %s208
        %p210 = pneg %p61
        %p211 = pneg %p58
        %s212 = sand.u32 %s80, 1
        %s213 = scalar_lea.sflag [#allocation6], %s212
        %s214 = sand.u32 %s80, 1
        %s215 = smul.addr %s214, 8
        %s216 = scalar_lea.vmem [#allocation5], %s215
        %p217 = pneg %p93
        %p218 = pneg %p90
        %p219 = pneg %p119
        %p220 = pneg %p116
        %s221 = sand.u32 %s106, 1
        %s222 = scalar_lea.sflag [#allocation4], %s221
        %s223 = sand.u32 %s106, 1
        %s224 = smul.addr %s223, 8
        %s225 = scalar_lea.vmem [#allocation7], %s224
        %s226 = sadd.s32 %s26, %s27
        %p227 = scmp.lt.s32.totalorder %s226, 0
        %s228 = scalar_select %p227, %s226, 0
        %s229 = sadd.s32 %s26, %s27
        %p230 = scmp.lt.s32.totalorder %s229, 0
        %s231 = scalar_select %p230, %s229, 0
        %p232 = scmp.eq.s32.totalorder %s27, 0
        // Predicated region
        $region37: #{tpu_custom_call.1} parent=27 // pred_check
          %p233 = pneg %p232
        $region38: #{tpu_custom_call.1} parent=27 // pred_check_branch
          %235 = sbr.rel (%p233) target = $region40
        $region39: #{tpu_custom_call.1} parent=27 // pred_region
          %236 = vst [vmem:[%s225] sm:$0xff] 0.0
        $region40: #{tpu_custom_call.1} parent=27 // pred_fallthru
          _
        %v237 = vld [vmem:[%s191] sm:$0xff]
        %v238 = vld [vmem:[%s200] sm:$0xff]
        %v239 = vsub.f32 %v237, %v238
        %v240 = vxor.u32 %v239, 2147483648
        %v241 = vmul.f32 %v240, 1.442695
        %v242 = vpow.pop %v241
        %v243 = vadd.f32 %v242, 1.0
        %v244 = vrcp.pop %v243
        %v245 = vmul.f32 1.0, %v244
        %v246 = vadd.f32 %v245, 1e-10
        %v247 = vlog2.pop %v246
        %v248 = vmul.f32 %v247, 0.6931472
        %v249 = vsub.f32 0.0, %v248
        %v250 = vlaneseq
        %v251 = vshrl.u32 %v250, 7
        %s252 = sadd.s32 %s26, %s27
        %s253 = smul.u32 %s252, 8
        %v254 = vstv %s253
        %v255 = vadd.s32 %v254, %v251
        %vm256 = vcmp.lt.s32.totalorder %v255, 0
        %v257 = vlaneseq
        %v258 = vand.u32 %v257, 127
        %vm259 = vcmp.eq.s32.totalorder %v255, 0
        %vm260 = vcmp.lt.s32.totalorder %v258, 8
        %vm261 = vmand %vm259, %vm260
        %vm262 = vmor %vm256, %vm261
        %v263 = vsel %vm262, %v249, 0.0
        %v264 = vld [vmem:[%s225] sm:$0xff]
        %v265 = vadd.f32 %v263, 0.0
        %v266 = vadd.f32 %v264, %v265
        %267 = vst [vmem:[%s225] sm:$0xff] %v266
        %s268 = sand.u32 %s106, 1
        %s269 = scalar_lea.sflag [#allocation4], %s268
        %s270 = sand.u32 %s106, 1
        %s271 = smul.addr %s270, 8
        %s272 = scalar_lea.vmem [#allocation7], %s271
        // Predicated region
        $region41: #{tpu_custom_call.1} parent=27 // pred_check
          %p273 = pneg %p116
        $region42: #{tpu_custom_call.1} parent=27 // pred_check_branch
          %275 = sbr.rel (%p273) target = $region44
        $region43: #{tpu_custom_call.1} parent=27 // pred_region
          %s277 = ssub.s32 128, 128
          %278 = vsyncadd %s269, %s277
          %s279 = smul.addr %s26, 128
          %s280 = scalar_lea.hbm %s2, %s279
          %s282 = sshll.u32 %s272, 4
          %s283 = int_to_ptr.vmem [resolvable:$true] %s282
          %285 = dma.vmem_to_hbm [thread:$0]  %s283, 128, %s280, %s269
        $region44: #{tpu_custom_call.1} parent=27 // pred_fallthru
          _
      $region28: #{tpu_custom_call.1} parent=5 // pred_fallthru
        _
      %p286 = scmp.le.s32.totalorder 2, %s17
      // Predicated region
      $region45: #{tpu_custom_call.1} parent=5 // pred_check
        %p287 = pneg %p286
      $region46: #{tpu_custom_call.1} parent=5 // pred_check_branch
        %289 = sbr.rel (%p287) target = $region48
      $region47: #{tpu_custom_call.1} parent=5 // pred_region
        %s290 = ssub.s32 %s17, 2
        // Predicated region
        $region49: #{tpu_custom_call.1} parent=47 // pred_check
          %p291 = pneg %p122
        $region50: #{tpu_custom_call.1} parent=47 // pred_check_branch
          %293 = sbr.rel (%p291) target = $region52
        $region51: #{tpu_custom_call.1} parent=47 // pred_region
          %s294 = sand.u32 %s107, 1
          %s295 = scalar_lea.sflag [#allocation4], %s294
          %s296 = sand.u32 %s107, 1
          %s297 = smul.addr %s296, 8
          %s298 = scalar_lea.vmem [#allocation7], %s297
          %299 = dma.done %s295, 128
        $region52: #{tpu_custom_call.1} parent=47 // pred_fallthru
          _
      $region48: #{tpu_custom_call.1} parent=5 // pred_fallthru
        _
    $region6: #{tpu_custom_call.1} parent=1 // loop_footer
      %s21 = sadd.s32 1, %s17
    $region7: #{tpu_custom_call.1} parent=1 // loop_footer_branch
      %16 = sbr.rel target = $region3
    $region8: #{tpu_custom_call.1} parent=1 // loop_exit
      _
    %300 = vsyncpa [#allocation3], 1
    %s301 = scalar_lea.sflag [#allocation3], 1
    %302 = vsyncpa %s301, 1
    %303 = vsyncpa [#allocation6], 1
    %s304 = scalar_lea.sflag [#allocation6], 1
    %305 = vsyncpa %s304, 1
    %306 = vsyncpa [#allocation4], 1
    %s307 = scalar_lea.sflag [#allocation4], 1
    %308 = vsyncpa %s307, 1

</llo_original>
